<compile_context>
chip_gen: v5e
topology: v5e:2x2
jax: 0.10.0
libtpu: 0.0.40
codegen_flags: <defaults>
</compile_context>

<pallas_src>
import jax
import jax.numpy as jnp
from jax.experimental import pallas as pl
from jax.experimental.pallas import tpu as pltpu

NUM_CLASSES = 4
OUT_PAD = 128  # lane-dense padded output width


def _leaky_relu(v, slope=0.1):
    return jnp.where(v > 0, v, slope * v)


def _round_up(n, m):
    return ((n + m - 1) // m) * m


def linear_model3_kernel(
    x_ref,
    w1_ref, b1_ref,
    w2a_ref, b2a_ref,
    w2b_ref, b2b_ref,
    w3a_ref, b3a_ref,
    w3b_ref, b3b_ref,
    o_ref,
):
    bf16 = jnp.bfloat16
    x = x_ref[...].astype(bf16)                                   # (TB, 16)

    # fc1: Linear(16, 32) + LeakyReLU(0.1)
    h1 = jnp.dot(x, w1_ref[...], preferred_element_type=jnp.float32)
    h1 = _leaky_relu(h1 + b1_ref[...])                            # (TB, 32) f32

    # fc2_1 || fc2_2 first layers, fused as one (32, 128) matmul.
    h2a = jnp.dot(h1.astype(bf16), w2a_ref[...],
                  preferred_element_type=jnp.float32)
    h2a = _leaky_relu(h2a + b2a_ref[...])                         # (TB, 128)

    # fc2_1 || fc2_2 second layers, fused as a (128, 128) block-diagonal matmul.
    h2b = jnp.dot(h2a.astype(bf16), w2b_ref[...],
                  preferred_element_type=jnp.float32)
    h2b = _leaky_relu(h2b + b2b_ref[...])                         # (TB, 128) == concat(h21, h22)

    # fc3 first layer: Linear(128, 128) over the (implicit) concat.
    h3 = jnp.dot(h2b.astype(bf16), w3a_ref[...],
                 preferred_element_type=jnp.float32)
    h3 = _leaky_relu(h3 + b3a_ref[...])                           # (TB, 128)

    # fc3 second layer: Linear(128, 4) padded to 128 lanes + masked Softmax.
    logits = jnp.dot(h3.astype(bf16), w3b_ref[...],
                     preferred_element_type=jnp.float32)
    logits = logits + b3b_ref[...]                                # (TB, 128)
    lane = jax.lax.broadcasted_iota(jnp.int32, logits.shape, 1)
    logits = jnp.where(lane < NUM_CLASSES, logits, -1e30)         # mask pad lanes

    m = jnp.max(logits, axis=-1, keepdims=True)
    e = jnp.exp(logits - m)
    denom = jnp.sum(e, axis=-1, keepdims=True)
    o_ref[...] = (e * pl.reciprocal(denom, approx=True)).astype(o_ref.dtype)


def linear_model3_forward(x, packed, *, max_tb=1024):
    """x: (B, 16) float32. packed: dict from pack_params() (bf16 weights, (in,out) layout)."""
    B = x.shape[0]
    TB = min(max_tb, _round_up(max(B, 8), 8))     # sublane-aligned batch tile
    B_pad = _round_up(B, TB)
    if B_pad != B:
        x = jnp.pad(x, ((0, B_pad - B), (0, 0)))
    grid = (B_pad // TB,)

    weights = (
        packed["w1"], packed["b1"],
        packed["w2a"], packed["b2a"],
        packed["w2b"], packed["b2b"],
        packed["w3a"], packed["b3a"],
        packed["w3b"], packed["b3b"],
    )

    def const_spec(a):
        # Full-array block, same block index every grid step -> stays VMEM-resident.
        return pl.BlockSpec(a.shape, lambda i: (0, 0))

    grid_spec = pltpu.PrefetchScalarGridSpec(
        num_scalar_prefetch=0,
        grid=grid,
        in_specs=[pl.BlockSpec((TB, 16), lambda i: (i, 0))]
                 + [const_spec(w) for w in weights],
        out_specs=pl.BlockSpec((TB, OUT_PAD), lambda i: (i, 0)),
    )

    out = pl.pallas_call(
        linear_model3_kernel,
        out_shape=jax.ShapeDtypeStruct((B_pad, OUT_PAD), jnp.float32),
        grid_spec=grid_spec,
        compiler_params=pltpu.CompilerParams(
            dimension_semantics=("parallel",)),
    )(x, *weights)
    return out[:B, :NUM_CLASSES]


def init_raw_params(key, hid_dim1=32, hid_dim2=64, hid_dim3=128):
    """Deterministic synthetic init, matching the PyTorch module layout (stored as (in, out))."""
    keys = jax.random.split(key, 16)

    def w(k, fan_in, fan_out):
        return (jax.random.normal(k, (fan_in, fan_out), jnp.float32)
                * (1.0 / jnp.sqrt(fan_in)))

    def b(k, fan_out):
        return jax.random.normal(k, (1, fan_out), jnp.float32) * 0.01

    return {
        "w1": w(keys[0], 16, hid_dim1),             "b1": b(keys[1], hid_dim1),
        "w21a": w(keys[2], hid_dim1, hid_dim2),     "b21a": b(keys[3], hid_dim2),
        "w21b": w(keys[4], hid_dim2, hid_dim2),     "b21b": b(keys[5], hid_dim2),
        "w22a": w(keys[6], hid_dim1, hid_dim2),     "b22a": b(keys[7], hid_dim2),
        "w22b": w(keys[8], hid_dim2, hid_dim2),     "b22b": b(keys[9], hid_dim2),
        "w3a": w(keys[10], 2 * hid_dim2, hid_dim3), "b3a": b(keys[11], hid_dim3),
        "w3b": w(keys[12], hid_dim3, NUM_CLASSES),  "b3b": b(keys[13], NUM_CLASSES),
    }


def pack_params(raw):
    """Fuse the two branches into lane-dense 128-wide weights; cast weights to bf16."""
    bf16 = jnp.bfloat16
    h2 = raw["w21b"].shape[0]
    # Fused first fc2 layer: (32, 128) = [w21a | w22a]
    w2a = jnp.concatenate([raw["w21a"], raw["w22a"]], axis=1)
    b2a = jnp.concatenate([raw["b21a"], raw["b22a"]], axis=1)
    # Fused second fc2 layer: (128, 128) block-diagonal of (w21b, w22b)
    z = jnp.zeros((h2, h2), jnp.float32)
    w2b = jnp.block([[raw["w21b"], z], [z, raw["w22b"]]])
    b2b = jnp.concatenate([raw["b21b"], raw["b22b"]], axis=1)
    # Final layer padded to 128 lane-dense output columns (zeros beyond class 4)
    h3 = raw["w3b"].shape[0]
    w3b = jnp.zeros((h3, OUT_PAD), jnp.float32).at[:, :NUM_CLASSES].set(raw["w3b"])
    b3b = jnp.zeros((1, OUT_PAD), jnp.float32).at[:, :NUM_CLASSES].set(raw["b3b"])
    return {
        "w1": raw["w1"].astype(bf16),   "b1": raw["b1"],
        "w2a": w2a.astype(bf16),        "b2a": b2a,
        "w2b": w2b.astype(bf16),        "b2b": b2b,
        "w3a": raw["w3a"].astype(bf16), "b3a": raw["b3a"],
        "w3b": w3b.astype(bf16),        "b3b": b3b,
    }


def reference_forward(x, raw):
    """Plain-JAX reference matching the PyTorch module, with the same bf16 matmul operands."""
    bf16 = jnp.bfloat16
    dot = lambda a, w: jnp.dot(a.astype(bf16), w.astype(bf16),
                               preferred_element_type=jnp.float32)
    lr = lambda v: jnp.where(v > 0, v, 0.1 * v)
    h1 = lr(dot(x, raw["w1"]) + raw["b1"])
    h21 = lr(dot(lr(dot(h1, raw["w21a"]) + raw["b21a"]), raw["w21b"]) + raw["b21b"])
    h22 = lr(dot(lr(dot(h1, raw["w22a"]) + raw["b22a"]), raw["w22b"]) + raw["b22b"])
    h2 = jnp.concatenate([h21, h22], axis=-1)
    h3 = lr(dot(h2, raw["w3a"]) + raw["b3a"])
    logits = dot(h3, raw["w3b"]) + raw["b3b"]
    return jax.nn.softmax(logits, axis=-1)


if __name__ == "__main__":
    key = jax.random.PRNGKey(0)
    kx, kp = jax.random.split(key)

    # Small smoke-test batch; the structural wins (pipelining, megacore,
    # 128-lane bf16 MXU dots) only pay off at B in the thousands.
    B = 8
    x = jax.random.normal(kx, (B, 16), jnp.float32)
    raw = init_raw_params(kp)
    packed = pack_params(raw)

    out = linear_model3_forward(x, packed)
    out = jax.block_until_ready(out)

    ref = reference_forward(x, raw)
    assert out.shape == (B, NUM_CLASSES)
    assert bool(jnp.all(jnp.isfinite(out)))
    assert jnp.allclose(out, ref, atol=2e-3, rtol=0), "mismatch vs reference"
    assert jnp.allclose(jnp.sum(out, axis=-1), 1.0, atol=2e-3), "softmax rows must sum to 1"

    print("KERNEL_OK")
</pallas_src>

<mosaic_0001>
module attributes {stable_mosaic.version = 11 : i64} {
  func.func @linear_model3_kernel(%arg0: i32, %arg1: memref<8x16xf32, #tpu.memory_space<vmem>>, %arg2: memref<16x32xbf16, #tpu.memory_space<vmem>>, %arg3: memref<1x32xf32, #tpu.memory_space<vmem>>, %arg4: memref<32x128xbf16, #tpu.memory_space<vmem>>, %arg5: memref<1x128xf32, #tpu.memory_space<vmem>>, %arg6: memref<128x128xbf16, #tpu.memory_space<vmem>>, %arg7: memref<1x128xf32, #tpu.memory_space<vmem>>, %arg8: memref<128x128xbf16, #tpu.memory_space<vmem>>, %arg9: memref<1x128xf32, #tpu.memory_space<vmem>>, %arg10: memref<128x128xbf16, #tpu.memory_space<vmem>>, %arg11: memref<1x128xf32, #tpu.memory_space<vmem>>, %arg12: memref<8x128xf32, #tpu.memory_space<vmem>>) attributes {dimension_semantics = [#tpu.dimension_semantics<parallel>], iteration_bounds = array<i64: 1>, scalar_prefetch = 0 : i64, scratch_operands = 0 : i64, tpu.core_type = #tpu.core_type<tc>, window_params = [{transform_indices = @transform_0, window_bounds = array<i64: 8, 16>}, {pipeline_mode = #tpu.pipeline_mode<synchronous>, transform_indices = @transform_1, window_bounds = array<i64: 16, 32>}, {pipeline_mode = #tpu.pipeline_mode<synchronous>, transform_indices = @transform_2, window_bounds = array<i64: 1, 32>}, {pipeline_mode = #tpu.pipeline_mode<synchronous>, transform_indices = @transform_3, window_bounds = array<i64: 32, 128>}, {pipeline_mode = #tpu.pipeline_mode<synchronous>, transform_indices = @transform_4, window_bounds = array<i64: 1, 128>}, {pipeline_mode = #tpu.pipeline_mode<synchronous>, transform_indices = @transform_5, window_bounds = array<i64: 128, 128>}, {pipeline_mode = #tpu.pipeline_mode<synchronous>, transform_indices = @transform_6, window_bounds = array<i64: 1, 128>}, {pipeline_mode = #tpu.pipeline_mode<synchronous>, transform_indices = @transform_7, window_bounds = array<i64: 128, 128>}, {pipeline_mode = #tpu.pipeline_mode<synchronous>, transform_indices = @transform_8, window_bounds = array<i64: 1, 128>}, {pipeline_mode = #tpu.pipeline_mode<synchronous>, transform_indices = @transform_9, window_bounds = array<i64: 128, 128>}, {pipeline_mode = #tpu.pipeline_mode<synchronous>, transform_indices = @transform_10, window_bounds = array<i64: 1, 128>}, {transform_indices = @transform_11, window_bounds = array<i64: 8, 128>}]} {
    %c0 = arith.constant 0 : index
    %c0_0 = arith.constant 0 : index
    %0 = vector.load %arg1[%c0, %c0_0] : memref<8x16xf32, #tpu.memory_space<vmem>>, vector<8x16xf32>
    %1 = arith.truncf %0 : vector<8x16xf32> to vector<8x16xbf16>
    %c0_1 = arith.constant 0 : index
    %c0_2 = arith.constant 0 : index
    %2 = vector.load %arg2[%c0_1, %c0_2] : memref<16x32xbf16, #tpu.memory_space<vmem>>, vector<16x32xbf16>
    %cst = arith.constant dense<0.000000e+00> : vector<8x32xf32>
    %3 = tpu.matmul %1, %2, %cst {dimension_numbers = #tpu.dot_dimension_numbers<[1], [0], [0], [1], [0, 0, 1, 1], [], []>} : vector<8x16xbf16>, vector<16x32xbf16>, vector<8x32xf32> -> vector<8x32xf32>
    %c0_3 = arith.constant 0 : index
    %c0_4 = arith.constant 0 : index
    %4 = vector.load %arg3[%c0_3, %c0_4] : memref<1x32xf32, #tpu.memory_space<vmem>>, vector<1x32xf32>
    %5 = vector.broadcast %4 : vector<1x32xf32> to vector<8x32xf32>
    %6 = arith.addf %3, %5 : vector<8x32xf32>
    %cst_5 = arith.constant 0.000000e+00 : f32
    %7 = vector.broadcast %cst_5 : f32 to vector<8x32xf32>
    %8 = arith.cmpf ogt, %6, %7 : vector<8x32xf32>
    %cst_6 = arith.constant 1.000000e-01 : f32
    %9 = vector.broadcast %cst_6 : f32 to vector<8x32xf32>
    %10 = arith.mulf %9, %6 : vector<8x32xf32>
    %11 = arith.select %8, %6, %10 : vector<8x32xi1>, vector<8x32xf32>
    %12 = arith.truncf %11 : vector<8x32xf32> to vector<8x32xbf16>
    %c0_7 = arith.constant 0 : index
    %c0_8 = arith.constant 0 : index
    %13 = vector.load %arg4[%c0_7, %c0_8] : memref<32x128xbf16, #tpu.memory_space<vmem>>, vector<32x128xbf16>
    %cst_9 = arith.constant dense<0.000000e+00> : vector<8x128xf32>
    %14 = tpu.matmul %12, %13, %cst_9 {dimension_numbers = #tpu.dot_dimension_numbers<[1], [0], [0], [1], [0, 0, 1, 1], [], []>} : vector<8x32xbf16>, vector<32x128xbf16>, vector<8x128xf32> -> vector<8x128xf32>
    %c0_10 = arith.constant 0 : index
    %c0_11 = arith.constant 0 : index
    %15 = vector.load %arg5[%c0_10, %c0_11] : memref<1x128xf32, #tpu.memory_space<vmem>>, vector<1x128xf32>
    %16 = vector.broadcast %15 : vector<1x128xf32> to vector<8x128xf32>
    %17 = arith.addf %14, %16 : vector<8x128xf32>
    %cst_12 = arith.constant 0.000000e+00 : f32
    %18 = vector.broadcast %cst_12 : f32 to vector<8x128xf32>
    %19 = arith.cmpf ogt, %17, %18 : vector<8x128xf32>
    %cst_13 = arith.constant 1.000000e-01 : f32
    %20 = vector.broadcast %cst_13 : f32 to vector<8x128xf32>
    %21 = arith.mulf %20, %17 : vector<8x128xf32>
    %22 = arith.select %19, %17, %21 : vector<8x128xi1>, vector<8x128xf32>
    %23 = arith.truncf %22 : vector<8x128xf32> to vector<8x128xbf16>
    %c0_14 = arith.constant 0 : index
    %c0_15 = arith.constant 0 : index
    %24 = vector.load %arg6[%c0_14, %c0_15] : memref<128x128xbf16, #tpu.memory_space<vmem>>, vector<128x128xbf16>
    %cst_16 = arith.constant dense<0.000000e+00> : vector<8x128xf32>
    %25 = tpu.matmul %23, %24, %cst_16 {dimension_numbers = #tpu.dot_dimension_numbers<[1], [0], [0], [1], [0, 0, 1, 1], [], []>} : vector<8x128xbf16>, vector<128x128xbf16>, vector<8x128xf32> -> vector<8x128xf32>
    %c0_17 = arith.constant 0 : index
    %c0_18 = arith.constant 0 : index
    %26 = vector.load %arg7[%c0_17, %c0_18] : memref<1x128xf32, #tpu.memory_space<vmem>>, vector<1x128xf32>
    %27 = vector.broadcast %26 : vector<1x128xf32> to vector<8x128xf32>
    %28 = arith.addf %25, %27 : vector<8x128xf32>
    %cst_19 = arith.constant 0.000000e+00 : f32
    %29 = vector.broadcast %cst_19 : f32 to vector<8x128xf32>
    %30 = arith.cmpf ogt, %28, %29 : vector<8x128xf32>
    %cst_20 = arith.constant 1.000000e-01 : f32
    %31 = vector.broadcast %cst_20 : f32 to vector<8x128xf32>
    %32 = arith.mulf %31, %28 : vector<8x128xf32>
    %33 = arith.select %30, %28, %32 : vector<8x128xi1>, vector<8x128xf32>
    %34 = arith.truncf %33 : vector<8x128xf32> to vector<8x128xbf16>
    %c0_21 = arith.constant 0 : index
    %c0_22 = arith.constant 0 : index
    %35 = vector.load %arg8[%c0_21, %c0_22] : memref<128x128xbf16, #tpu.memory_space<vmem>>, vector<128x128xbf16>
    %cst_23 = arith.constant dense<0.000000e+00> : vector<8x128xf32>
    %36 = tpu.matmul %34, %35, %cst_23 {dimension_numbers = #tpu.dot_dimension_numbers<[1], [0], [0], [1], [0, 0, 1, 1], [], []>} : vector<8x128xbf16>, vector<128x128xbf16>, vector<8x128xf32> -> vector<8x128xf32>
    %c0_24 = arith.constant 0 : index
    %c0_25 = arith.constant 0 : index
    %37 = vector.load %arg9[%c0_24, %c0_25] : memref<1x128xf32, #tpu.memory_space<vmem>>, vector<1x128xf32>
    %38 = vector.broadcast %37 : vector<1x128xf32> to vector<8x128xf32>
    %39 = arith.addf %36, %38 : vector<8x128xf32>
    %cst_26 = arith.constant 0.000000e+00 : f32
    %40 = vector.broadcast %cst_26 : f32 to vector<8x128xf32>
    %41 = arith.cmpf ogt, %39, %40 : vector<8x128xf32>
    %cst_27 = arith.constant 1.000000e-01 : f32
    %42 = vector.broadcast %cst_27 : f32 to vector<8x128xf32>
    %43 = arith.mulf %42, %39 : vector<8x128xf32>
    %44 = arith.select %41, %39, %43 : vector<8x128xi1>, vector<8x128xf32>
    %45 = arith.truncf %44 : vector<8x128xf32> to vector<8x128xbf16>
    %c0_28 = arith.constant 0 : index
    %c0_29 = arith.constant 0 : index
    %46 = vector.load %arg10[%c0_28, %c0_29] : memref<128x128xbf16, #tpu.memory_space<vmem>>, vector<128x128xbf16>
    %cst_30 = arith.constant dense<0.000000e+00> : vector<8x128xf32>
    %47 = tpu.matmul %45, %46, %cst_30 {dimension_numbers = #tpu.dot_dimension_numbers<[1], [0], [0], [1], [0, 0, 1, 1], [], []>} : vector<8x128xbf16>, vector<128x128xbf16>, vector<8x128xf32> -> vector<8x128xf32>
    %c0_31 = arith.constant 0 : index
    %c0_32 = arith.constant 0 : index
    %48 = vector.load %arg11[%c0_31, %c0_32] : memref<1x128xf32, #tpu.memory_space<vmem>>, vector<1x128xf32>
    %49 = vector.broadcast %48 : vector<1x128xf32> to vector<8x128xf32>
    %50 = arith.addf %47, %49 : vector<8x128xf32>
    %51 = tpu.iota {dimensions = array<i32: 1>} : vector<8x128xi32>
    %c4_i32 = arith.constant 4 : i32
    %52 = vector.broadcast %c4_i32 : i32 to vector<8x128xi32>
    %53 = arith.cmpi slt, %51, %52 : vector<8x128xi32>
    %cst_33 = arith.constant -1.000000e+30 : f32
    %54 = vector.broadcast %cst_33 : f32 to vector<8x128xf32>
    %55 = arith.select %53, %50, %54 : vector<8x128xi1>, vector<8x128xf32>
    %cst_34 = arith.constant dense<0xFF800000> : vector<8xf32>
    %56 = vector.multi_reduction <maximumf>, %55, %cst_34 [1] : vector<8x128xf32> to vector<8xf32>
    %57 = vector.shape_cast %56 : vector<8xf32> to vector<8x1xf32>
    %58 = vector.broadcast %57 : vector<8x1xf32> to vector<8x128xf32>
    %59 = arith.subf %55, %58 : vector<8x128xf32>
    %60 = math.exp %59 : vector<8x128xf32>
    %cst_35 = arith.constant dense<0.000000e+00> : vector<8xf32>
    %61 = vector.multi_reduction <add>, %60, %cst_35 [1] : vector<8x128xf32> to vector<8xf32>
    %62 = vector.shape_cast %61 : vector<8xf32> to vector<8x1xf32>
    %63 = tpu.reciprocal %62 {approx = true} : vector<8x1xf32> -> vector<8x1xf32>
    %64 = vector.broadcast %63 : vector<8x1xf32> to vector<8x128xf32>
    %65 = arith.mulf %60, %64 : vector<8x128xf32>
    %c0_36 = arith.constant 0 : index
    %c0_37 = arith.constant 0 : index
    %66 = vector.load %arg12[%c0_36, %c0_37] : memref<8x128xf32, #tpu.memory_space<vmem>>, vector<8x128xf32>
    tpu.vector_store %arg12[%c0_36, %c0_37], %65 {strides = array<i32>} : memref<8x128xf32, #tpu.memory_space<vmem>>, vector<8x128xf32>,
    return
  }
  func.func @transform_0(%arg0: i32) -> (i32, i32) {
    %c0_i32 = arith.constant 0 : i32
    %c0_i32_0 = arith.constant 0 : i32
    return %arg0, %c0_i32 : i32, i32
  }
  func.func @transform_1(%arg0: i32) -> (i32, i32) {
    %c0_i32 = arith.constant 0 : i32
    %c0_i32_0 = arith.constant 0 : i32
    %c0_i32_1 = arith.constant 0 : i32
    return %c0_i32, %c0_i32_0 : i32, i32
  }
  func.func @transform_2(%arg0: i32) -> (i32, i32) {
    %c0_i32 = arith.constant 0 : i32
    %c0_i32_0 = arith.constant 0 : i32
    %c0_i32_1 = arith.constant 0 : i32
    return %c0_i32, %c0_i32_0 : i32, i32
  }
  func.func @transform_3(%arg0: i32) -> (i32, i32) {
    %c0_i32 = arith.constant 0 : i32
    %c0_i32_0 = arith.constant 0 : i32
    %c0_i32_1 = arith.constant 0 : i32
    return %c0_i32, %c0_i32_0 : i32, i32
  }
  func.func @transform_4(%arg0: i32) -> (i32, i32) {
    %c0_i32 = arith.constant 0 : i32
    %c0_i32_0 = arith.constant 0 : i32
    %c0_i32_1 = arith.constant 0 : i32
    return %c0_i32, %c0_i32_0 : i32, i32
  }
  func.func @transform_5(%arg0: i32) -> (i32, i32) {
    %c0_i32 = arith.constant 0 : i32
    %c0_i32_0 = arith.constant 0 : i32
    %c0_i32_1 = arith.constant 0 : i32
    return %c0_i32, %c0_i32_0 : i32, i32
  }
  func.func @transform_6(%arg0: i32) -> (i32, i32) {
    %c0_i32 = arith.constant 0 : i32
    %c0_i32_0 = arith.constant 0 : i32
    %c0_i32_1 = arith.constant 0 : i32
    return %c0_i32, %c0_i32_0 : i32, i32
  }
  func.func @transform_7(%arg0: i32) -> (i32, i32) {
    %c0_i32 = arith.constant 0 : i32
    %c0_i32_0 = arith.constant 0 : i32
    %c0_i32_1 = arith.constant 0 : i32
    return %c0_i32, %c0_i32_0 : i32, i32
  }
  func.func @transform_8(%arg0: i32) -> (i32, i32) {
    %c0_i32 = arith.constant 0 : i32
    %c0_i32_0 = arith.constant 0 : i32
    %c0_i32_1 = arith.constant 0 : i32
    return %c0_i32, %c0_i32_0 : i32, i32
  }
  func.func @transform_9(%arg0: i32) -> (i32, i32) {
    %c0_i32 = arith.constant 0 : i32
    %c0_i32_0 = arith.constant 0 : i32
    %c0_i32_1 = arith.constant 0 : i32
    return %c0_i32, %c0_i32_0 : i32, i32
  }
  func.func @transform_10(%arg0: i32) -> (i32, i32) {
    %c0_i32 = arith.constant 0 : i32
    %c0_i32_0 = arith.constant 0 : i32
    %c0_i32_1 = arith.constant 0 : i32
    return %c0_i32, %c0_i32_0 : i32, i32
  }
  func.func @transform_11(%arg0: i32) -> (i32, i32) {
    %c0_i32 = arith.constant 0 : i32
    %c0_i32_0 = arith.constant 0 : i32
    return %arg0, %c0_i32 : i32, i32
  }
}

</mosaic_0001>

<llo_original>
// kernel: tpu_custom_call.1
$region0: #{tpu_custom_call.1}
  #allocation0 [shape = 'u32[]', space=smem, size = 0x4, offset = 0x4, fixed_abs, tag = 'smem constant byte address 0x4 - core index']
  #allocation1 [shape = 'u32[72,128]{1,0:T(1,128)}', space=vmem, size = 0x9000, scoped, tag = 'internal scratch']
  %s0 = inlined_call_operand.hbm [shape: f32[8,16], index: 0, kind: input, shape index: {}]
  %s1 = inlined_call_operand.hbm [shape: bf16[16,32], index: 1, kind: input, shape index: {}]
  %s2 = inlined_call_operand.vmem [shape: f32[1,32], index: 2, kind: input, shape index: {}]
  %s3 = inlined_call_operand.hbm [shape: bf16[32,128], index: 3, kind: input, shape index: {}]
  %s4 = inlined_call_operand.vmem [shape: f32[1,128], index: 4, kind: input, shape index: {}]
  %s5 = inlined_call_operand.hbm [shape: bf16[128,128], index: 5, kind: input, shape index: {}]
  %s6 = inlined_call_operand.vmem [shape: f32[1,128], index: 6, kind: input, shape index: {}]
  %s7 = inlined_call_operand.hbm [shape: bf16[128,128], index: 7, kind: input, shape index: {}]
  %s8 = inlined_call_operand.vmem [shape: f32[1,128], index: 8, kind: input, shape index: {}]
  %s9 = inlined_call_operand.hbm [shape: bf16[128,128], index: 9, kind: input, shape index: {}]
  %s10 = inlined_call_operand.vmem [shape: f32[1,128], index: 10, kind: input, shape index: {}]
  %s11 = inlined_call_operand.hbm [shape: f32[8,128], index: 11, kind: output, shape index: {}]
  %s12 = sld [smem:[#allocation0]]
  $region78: #{tpu_custom_call.1} parent=0
    _
  %s14 = ssub.s32 1, %s12
  %s15 = scalar_select 0, %s14, %s12
  $region1: #{tpu_custom_call.1} parent=0
    #allocation2 [shape = 'u8[4096]{0}', space=vmem, size = 0x1000, scoped, tag = 'input window, operand 0, single buffered']
    #allocation3 [shape = 's32[1]{0}', space=sflag, size = 0x4, scoped, tag = 'scoped memory for tpu_custom_call.1']
    #allocation4 [shape = 's32[1]{0}', space=sflag, size = 0x4, scoped, tag = 'scoped memory for tpu_custom_call.1']
    #allocation5 [shape = 'u8[4096]{0}', space=vmem, size = 0x1000, scoped, tag = 'input window, operand 1, single buffered']
    #allocation6 [shape = 's32[1]{0}', space=sflag, size = 0x4, scoped, tag = 'scoped memory for tpu_custom_call.1']
    #allocation7 [shape = 'u8[8192]{0}', space=vmem, size = 0x2000, scoped, tag = 'input window, operand 3, single buffered']
    #allocation8 [shape = 'u8[32768]{0}', space=vmem, size = 0x8000, scoped, tag = 'input window, operand 5, single buffered']
    #allocation9 [shape = 's32[1]{0}', space=sflag, size = 0x4, scoped, tag = 'scoped memory for tpu_custom_call.1']
    #allocation10 [shape = 'u8[32768]{0}', space=vmem, size = 0x8000, scoped, tag = 'input window, operand 7, single buffered']
    #allocation11 [shape = 'u8[32768]{0}', space=vmem, size = 0x8000, scoped, tag = 'input window, operand 9, single buffered']
    #allocation12 [shape = 's32[1]{0}', space=sflag, size = 0x4, scoped, tag = 'scoped memory for tpu_custom_call.1']
    #allocation13 [shape = 'u8[4096]{0}', space=vmem, size = 0x1000, scoped, tag = 'output window, operand 0, single buffered']
    %16 = vsyncpa [#allocation3], 0
    %17 = vsyncpa [#allocation6], 0
    %18 = vsyncpa [#allocation9], 0
    %19 = vsyncpa [#allocation12], 0
    %20 = vsyncpa [#allocation4], 0
    // Predicated region
    $region2: #{tpu_custom_call.1} parent=1 // pred_check
      _
    $region3: #{tpu_custom_call.1} parent=1 // pred_check_branch
      %22 = sbr.rel (0) target = $region5
    $region4: #{tpu_custom_call.1} parent=1 // pred_region
      %24 = vsyncadd [#allocation3], 0
      %s26 = sshll.u32 %s0, 4
      %s27 = int_to_ptr.hbm [resolvable:$true] %s26
      %s28 = sshll.u32 [#allocation2], 4
      %s29 = int_to_ptr.vmem [resolvable:$true] %s28
      %31 = dma.hbm_to_vmem [thread:$0]  %s27, 128, %s29, [#allocation3]
    $region5: #{tpu_custom_call.1} parent=1 // pred_fallthru
      _
    // Predicated region
    $region6: #{tpu_custom_call.1} parent=1 // pred_check
      _
    $region7: #{tpu_custom_call.1} parent=1 // pred_check_branch
      %33 = sbr.rel (0) target = $region9
    $region8: #{tpu_custom_call.1} parent=1 // pred_region
      %35 = vsyncadd [#allocation6], 0
      %s36 = sshll.u32 %s1, 4
      %s37 = int_to_ptr.hbm [resolvable:$true] %s36
      %s38 = sshll.u32 [#allocation5], 4
      %s39 = int_to_ptr.vmem [resolvable:$true] %s38
      %44 = dma.hbm_to_vmem [thread:$0]  %s37, 128, %s39, [#allocation6], 64, 64, 4
    $region9: #{tpu_custom_call.1} parent=1 // pred_fallthru
      _
    // Predicated region
    $region10: #{tpu_custom_call.1} parent=1 // pred_check
      _
    $region11: #{tpu_custom_call.1} parent=1 // pred_check_branch
      %46 = sbr.rel (0) target = $region13
    $region12: #{tpu_custom_call.1} parent=1 // pred_region
      _
    $region13: #{tpu_custom_call.1} parent=1 // pred_fallthru
      _
    // Predicated region
    $region14: #{tpu_custom_call.1} parent=1 // pred_check
      _
    $region15: #{tpu_custom_call.1} parent=1 // pred_check_branch
      %48 = sbr.rel (0) target = $region17
    $region16: #{tpu_custom_call.1} parent=1 // pred_region
      %50 = vsyncadd [#allocation6], 0
      %s51 = sshll.u32 %s3, 4
      %s52 = int_to_ptr.hbm [resolvable:$true] %s51
      %s53 = sshll.u32 [#allocation7], 4
      %s54 = int_to_ptr.vmem [resolvable:$true] %s53
      %59 = dma.hbm_to_vmem [thread:$0]  %s52, 256, %s54, [#allocation6], 64, 64, 4
    $region17: #{tpu_custom_call.1} parent=1 // pred_fallthru
      _
    // Predicated region
    $region18: #{tpu_custom_call.1} parent=1 // pred_check
      _
    $region19: #{tpu_custom_call.1} parent=1 // pred_check_branch
      %61 = sbr.rel (0) target = $region21
    $region20: #{tpu_custom_call.1} parent=1 // pred_region
      _
    $region21: #{tpu_custom_call.1} parent=1 // pred_fallthru
      _
    // Predicated region
    $region22: #{tpu_custom_call.1} parent=1 // pred_check
      _
    $region23: #{tpu_custom_call.1} parent=1 // pred_check_branch
      %63 = sbr.rel (0) target = $region25
    $region24: #{tpu_custom_call.1} parent=1 // pred_region
      %65 = vsyncadd [#allocation9], 0
      %s66 = sshll.u32 %s5, 4
      %s67 = int_to_ptr.hbm [resolvable:$true] %s66
      %s68 = sshll.u32 [#allocation8], 4
      %s69 = int_to_ptr.vmem [resolvable:$true] %s68
      %74 = dma.hbm_to_vmem [thread:$0]  %s67, 1024, %s69, [#allocation9], 64, 64, 4
    $region25: #{tpu_custom_call.1} parent=1 // pred_fallthru
      _
    // Predicated region
    $region26: #{tpu_custom_call.1} parent=1 // pred_check
      _
    $region27: #{tpu_custom_call.1} parent=1 // pred_check_branch
      %76 = sbr.rel (0) target = $region29
    $region28: #{tpu_custom_call.1} parent=1 // pred_region
      _
    $region29: #{tpu_custom_call.1} parent=1 // pred_fallthru
      _
    // Predicated region
    $region30: #{tpu_custom_call.1} parent=1 // pred_check
      _
    $region31: #{tpu_custom_call.1} parent=1 // pred_check_branch
      %78 = sbr.rel (0) target = $region33
    $region32: #{tpu_custom_call.1} parent=1 // pred_region
      %80 = vsyncadd [#allocation9], 0
      %s81 = sshll.u32 %s7, 4
      %s82 = int_to_ptr.hbm [resolvable:$true] %s81
      %s83 = sshll.u32 [#allocation10], 4
      %s84 = int_to_ptr.vmem [resolvable:$true] %s83
      %89 = dma.hbm_to_vmem [thread:$0]  %s82, 1024, %s84, [#allocation9], 64, 64, 4
    $region33: #{tpu_custom_call.1} parent=1 // pred_fallthru
      _
    // Predicated region
    $region34: #{tpu_custom_call.1} parent=1 // pred_check
      _
    $region35: #{tpu_custom_call.1} parent=1 // pred_check_branch
      %91 = sbr.rel (0) target = $region37
    $region36: #{tpu_custom_call.1} parent=1 // pred_region
      _
    $region37: #{tpu_custom_call.1} parent=1 // pred_fallthru
      _
    // Predicated region
    $region38: #{tpu_custom_call.1} parent=1 // pred_check
      _
    $region39: #{tpu_custom_call.1} parent=1 // pred_check_branch
      %93 = sbr.rel (0) target = $region41
    $region40: #{tpu_custom_call.1} parent=1 // pred_region
      %95 = vsyncadd [#allocation12], 0
      %s96 = sshll.u32 %s9, 4
      %s97 = int_to_ptr.hbm [resolvable:$true] %s96
      %s98 = sshll.u32 [#allocation11], 4
      %s99 = int_to_ptr.vmem [resolvable:$true] %s98
      %104 = dma.hbm_to_vmem [thread:$0]  %s97, 1024, %s99, [#allocation12], 64, 64, 4
    $region41: #{tpu_custom_call.1} parent=1 // pred_fallthru
      _
    // Predicated region
    $region42: #{tpu_custom_call.1} parent=1 // pred_check
      _
    $region43: #{tpu_custom_call.1} parent=1 // pred_check_branch
      %106 = sbr.rel (0) target = $region45
    $region44: #{tpu_custom_call.1} parent=1 // pred_region
      _
    $region45: #{tpu_custom_call.1} parent=1 // pred_fallthru
      _
    // Predicated region
    $region46: #{tpu_custom_call.1} parent=1 // pred_check
      _
    $region47: #{tpu_custom_call.1} parent=1 // pred_check_branch
      %108 = sbr.rel (0) target = $region49
    $region48: #{tpu_custom_call.1} parent=1 // pred_region
      %110 = dma.done [#allocation3], 128
    $region49: #{tpu_custom_call.1} parent=1 // pred_fallthru
      _
    // Predicated region
    $region50: #{tpu_custom_call.1} parent=1 // pred_check
      _
    $region51: #{tpu_custom_call.1} parent=1 // pred_check_branch
      %112 = sbr.rel (0) target = $region53
    $region52: #{tpu_custom_call.1} parent=1 // pred_region
      %114 = dma.done [#allocation6], 128
    $region53: #{tpu_custom_call.1} parent=1 // pred_fallthru
      _
    // Predicated region
    $region54: #{tpu_custom_call.1} parent=1 // pred_check
      _
    $region55: #{tpu_custom_call.1} parent=1 // pred_check_branch
      %116 = sbr.rel (0) target = $region57
    $region56: #{tpu_custom_call.1} parent=1 // pred_region
      %118 = dma.done [#allocation6], 256
    $region57: #{tpu_custom_call.1} parent=1 // pred_fallthru
      _
    // Predicated region
    $region58: #{tpu_custom_call.1} parent=1 // pred_check
      _
    $region59: #{tpu_custom_call.1} parent=1 // pred_check_branch
      %120 = sbr.rel (0) target = $region61
    $region60: #{tpu_custom_call.1} parent=1 // pred_region
      %122 = dma.done [#allocation9], 1024
    $region61: #{tpu_custom_call.1} parent=1 // pred_fallthru
      _
    // Predicated region
    $region62: #{tpu_custom_call.1} parent=1 // pred_check
      _
    $region63: #{tpu_custom_call.1} parent=1 // pred_check_branch
      %124 = sbr.rel (0) target = $region65
    $region64: #{tpu_custom_call.1} parent=1 // pred_region
      %126 = dma.done [#allocation9], 1024
    $region65: #{tpu_custom_call.1} parent=1 // pred_fallthru
      _
    // Predicated region
    $region66: #{tpu_custom_call.1} parent=1 // pred_check
      _
    $region67: #{tpu_custom_call.1} parent=1 // pred_check_branch
      %128 = sbr.rel (0) target = $region69
    $region68: #{tpu_custom_call.1} parent=1 // pred_region
      %130 = dma.done [#allocation12], 1024
    $region69: #{tpu_custom_call.1} parent=1 // pred_fallthru
      _
    %v132 = vld [vmem:[#allocation2] sm:$0xff]
    %v133 = vpack.c.bf16 %v132, %v132
    %v134 = vld [vmem:[#allocation5] sm:$0xf]
    %v135 = vld [vmem:[#allocation5 + $0x4] sm:$0xf]
    %v136 = vld [vmem:[%s2] sm:$0x1]
    %v138 = vperm.slane %v136, 0
    %v142 = vunpack.c.l.b16 %v134
    %v143 = vunpack.c.l.b16 %v135
    %v144 = vpack.c.b16 %v143, %v142
    %vm146 = vcmask 130048
    %v148 = vsel %vm146, %v133, 0
    %150 = vmatpush.bf16.msra.mxu0 0
    %151 = vmatpush.bf16.msra.mxu0 0
    %152 = vmatpush.bf16.msra.mxu0 0
    %153 = vmatpush.bf16.msra.mxu0 0
    %154 = vmatpush.bf16.msra.mxu0 0
    %155 = vmatpush.bf16.msra.mxu0 0
    %156 = vmatpush.bf16.msra.mxu0 0
    %157 = vmatpush.bf16.msra.mxu0 %v144
    %158 = vmatmul.bf16.gmra.mxu0 %v148
    %v159 = vpop.f32.mrf.mxu0
    %v160 = vadd.f32 %v138, %v159
    %v161 = vpop.f32.mrf.mxu0
    %162 = vdwg.mxu0
    %vm163 = vcmp.gt.f32.partialorder %v160, 0.0
    %v164 = vmul.f32 %v160, 0.1
    %v165 = vsel %vm163, %v160, %v164
    %v166 = vpack.c.bf16 %v165, %v165
    %v167 = vld [vmem:[#allocation7] sm:$0xf]
    %v168 = vld [vmem:[#allocation7 + $0x4] sm:$0xf]
    %v169 = vld [vmem:[#allocation7 + $0x8] sm:$0xf]
    %v170 = vld [vmem:[#allocation7 + $0xc] sm:$0xf]
    %v171 = vld [vmem:[%s4] sm:$0x1]
    %v173 = vperm.slane %v171, 0
    %v179 = vunpack.c.l.b16 %v167
    %v180 = vunpack.c.l.b16 %v168
    %v181 = vunpack.c.l.b16 %v169
    %v182 = vunpack.c.l.b16 %v170
    %v183 = vpack.c.b16 %v180, %v179
    %v184 = vpack.c.b16 %v182, %v181
    %vm187 = vcmask 261120
    %v189 = vsel %vm187, %v166, 0
    %191 = vmatpush.bf16.msra.mxu0 0
    %192 = vmatpush.bf16.msra.mxu0 0
    %193 = vmatpush.bf16.msra.mxu0 0
    %194 = vmatpush.bf16.msra.mxu0 0
    %195 = vmatpush.bf16.msra.mxu0 0
    %196 = vmatpush.bf16.msra.mxu0 0
    %197 = vmatpush.bf16.msra.mxu0 %v184
    %198 = vmatpush.bf16.msra.mxu0 %v183
    %199 = vmatmul.bf16.gmra.mxu0 %v189
    %v200 = vpop.f32.mrf.mxu0
    %v201 = vadd.f32 %v173, %v200
    %v202 = vpop.f32.mrf.mxu0
    %203 = vdwg.mxu0
    %vm204 = vcmp.gt.f32.partialorder %v201, 0.0
    %v205 = vmul.f32 %v201, 0.1
    %v206 = vsel %vm204, %v201, %v205
    %v207 = vpack.c.bf16 %v206, %v206
    %v208 = vld [vmem:[#allocation8] sm:$0xf]
    %v209 = vld [vmem:[#allocation8 + $0x4] sm:$0xf]
    %v210 = vld [vmem:[#allocation8 + $0x8] sm:$0xf]
    %v211 = vld [vmem:[#allocation8 + $0xc] sm:$0xf]
    %v212 = vld [vmem:[#allocation8 + $0x10] sm:$0xf]
    %v213 = vld [vmem:[#allocation8 + $0x14] sm:$0xf]
    %v214 = vld [vmem:[#allocation8 + $0x18] sm:$0xf]
    %v215 = vld [vmem:[#allocation8 + $0x1c] sm:$0xf]
    %v216 = vld [vmem:[#allocation8 + $0x20] sm:$0xf]
    %v217 = vld [vmem:[#allocation8 + $0x24] sm:$0xf]
    %v218 = vld [vmem:[#allocation8 + $0x28] sm:$0xf]
    %v219 = vld [vmem:[#allocation8 + $0x2c] sm:$0xf]
    %v220 = vld [vmem:[#allocation8 + $0x30] sm:$0xf]
    %v221 = vld [vmem:[#allocation8 + $0x34] sm:$0xf]
    %v222 = vld [vmem:[#allocation8 + $0x38] sm:$0xf]
    %v223 = vld [vmem:[#allocation8 + $0x3c] sm:$0xf]
    %v224 = vld [vmem:[%s6] sm:$0x1]
    %v226 = vperm.slane %v224, 0
    %v244 = vunpack.c.l.b16 %v208
    %v245 = vunpack.c.l.b16 %v209
    %v246 = vunpack.c.l.b16 %v210
    %v247 = vunpack.c.l.b16 %v211
    %v248 = vunpack.c.l.b16 %v212
    %v249 = vunpack.c.l.b16 %v213
    %v250 = vunpack.c.l.b16 %v214
    %v251 = vunpack.c.l.b16 %v215
    %v252 = vunpack.c.l.b16 %v216
    %v253 = vunpack.c.l.b16 %v217
    %v254 = vunpack.c.l.b16 %v218
    %v255 = vunpack.c.l.b16 %v219
    %v256 = vunpack.c.l.b16 %v220
    %v257 = vunpack.c.l.b16 %v221
    %v258 = vunpack.c.l.b16 %v222
    %v259 = vunpack.c.l.b16 %v223
    %v260 = vpack.c.b16 %v245, %v244
    %v261 = vpack.c.b16 %v247, %v246
    %v262 = vpack.c.b16 %v249, %v248
    %v263 = vpack.c.b16 %v251, %v250
    %v264 = vpack.c.b16 %v253, %v252
    %v265 = vpack.c.b16 %v255, %v254
    %v266 = vpack.c.b16 %v257, %v256
    %v267 = vpack.c.b16 %v259, %v258
    %276 = vmatpush.bf16.msra.mxu0 %v267
    %277 = vmatpush.bf16.msra.mxu0 %v266
    %278 = vmatpush.bf16.msra.mxu0 %v265
    %279 = vmatpush.bf16.msra.mxu0 %v264
    %280 = vmatpush.bf16.msra.mxu0 %v263
    %281 = vmatpush.bf16.msra.mxu0 %v262
    %282 = vmatpush.bf16.msra.mxu0 %v261
    %283 = vmatpush.bf16.msra.mxu0 %v260
    %284 = vmatmul.bf16.gmra.mxu0 %v207
    %v285 = vpop.f32.mrf.mxu0
    %v286 = vadd.f32 %v226, %v285
    %v287 = vpop.f32.mrf.mxu0
    %288 = vdwg.mxu0
    %vm289 = vcmp.gt.f32.partialorder %v286, 0.0
    %v290 = vmul.f32 %v286, 0.1
    %v291 = vsel %vm289, %v286, %v290
    %v292 = vpack.c.bf16 %v291, %v291
    %v293 = vld [vmem:[#allocation10] sm:$0xf]
    %v294 = vld [vmem:[#allocation10 + $0x4] sm:$0xf]
    %v295 = vld [vmem:[#allocation10 + $0x8] sm:$0xf]
    %v296 = vld [vmem:[#allocation10 + $0xc] sm:$0xf]
    %v297 = vld [vmem:[#allocation10 + $0x10] sm:$0xf]
    %v298 = vld [vmem:[#allocation10 + $0x14] sm:$0xf]
    %v299 = vld [vmem:[#allocation10 + $0x18] sm:$0xf]
    %v300 = vld [vmem:[#allocation10 + $0x1c] sm:$0xf]
    %v301 = vld [vmem:[#allocation10 + $0x20] sm:$0xf]
    %v302 = vld [vmem:[#allocation10 + $0x24] sm:$0xf]
    %v303 = vld [vmem:[#allocation10 + $0x28] sm:$0xf]
    %v304 = vld [vmem:[#allocation10 + $0x2c] sm:$0xf]
    %v305 = vld [vmem:[#allocation10 + $0x30] sm:$0xf]
    %v306 = vld [vmem:[#allocation10 + $0x34] sm:$0xf]
    %v307 = vld [vmem:[#allocation10 + $0x38] sm:$0xf]
    %v308 = vld [vmem:[#allocation10 + $0x3c] sm:$0xf]
    %v309 = vld [vmem:[%s8] sm:$0x1]
    %v311 = vperm.slane %v309, 0
    %v329 = vunpack.c.l.b16 %v293
    %v330 = vunpack.c.l.b16 %v294
    %v331 = vunpack.c.l.b16 %v295
    %v332 = vunpack.c.l.b16 %v296
    %v333 = vunpack.c.l.b16 %v297
    %v334 = vunpack.c.l.b16 %v298
    %v335 = vunpack.c.l.b16 %v299
    %v336 = vunpack.c.l.b16 %v300
    %v337 = vunpack.c.l.b16 %v301
    %v338 = vunpack.c.l.b16 %v302
    %v339 = vunpack.c.l.b16 %v303
    %v340 = vunpack.c.l.b16 %v304
    %v341 = vunpack.c.l.b16 %v305
    %v342 = vunpack.c.l.b16 %v306
    %v343 = vunpack.c.l.b16 %v307
    %v344 = vunpack.c.l.b16 %v308
    %v345 = vpack.c.b16 %v330, %v329
    %v346 = vpack.c.b16 %v332, %v331
    %v347 = vpack.c.b16 %v334, %v333
    %v348 = vpack.c.b16 %v336, %v335
    %v349 = vpack.c.b16 %v338, %v337
    %v350 = vpack.c.b16 %v340, %v339
    %v351 = vpack.c.b16 %v342, %v341
    %v352 = vpack.c.b16 %v344, %v343
    %361 = vmatpush.bf16.msra.mxu0 %v352
    %362 = vmatpush.bf16.msra.mxu0 %v351
    %363 = vmatpush.bf16.msra.mxu0 %v350
    %364 = vmatpush.bf16.msra.mxu0 %v349
    %365 = vmatpush.bf16.msra.mxu0 %v348
    %366 = vmatpush.bf16.msra.mxu0 %v347
    %367 = vmatpush.bf16.msra.mxu0 %v346
    %368 = vmatpush.bf16.msra.mxu0 %v345
    %369 = vmatmul.bf16.gmra.mxu0 %v292
    %v370 = vpop.f32.mrf.mxu0
    %v371 = vadd.f32 %v311, %v370
    %v372 = vpop.f32.mrf.mxu0
    %373 = vdwg.mxu0
    %vm374 = vcmp.gt.f32.partialorder %v371, 0.0
    %v375 = vmul.f32 %v371, 0.1
    %v376 = vsel %vm374, %v371, %v375
    %v377 = vpack.c.bf16 %v376, %v376
    %v378 = vld [vmem:[#allocation11] sm:$0xf]
    %v379 = vld [vmem:[#allocation11 + $0x4] sm:$0xf]
    %v380 = vld [vmem:[#allocation11 + $0x8] sm:$0xf]
    %v381 = vld [vmem:[#allocation11 + $0xc] sm:$0xf]
    %v382 = vld [vmem:[#allocation11 + $0x10] sm:$0xf]
    %v383 = vld [vmem:[#allocation11 + $0x14] sm:$0xf]
    %v384 = vld [vmem:[#allocation11 + $0x18] sm:$0xf]
    %v385 = vld [vmem:[#allocation11 + $0x1c] sm:$0xf]
    %v386 = vld [vmem:[#allocation11 + $0x20] sm:$0xf]
    %v387 = vld [vmem:[#allocation11 + $0x24] sm:$0xf]
    %v388 = vld [vmem:[#allocation11 + $0x28] sm:$0xf]
    %v389 = vld [vmem:[#allocation11 + $0x2c] sm:$0xf]
    %v390 = vld [vmem:[#allocation11 + $0x30] sm:$0xf]
    %v391 = vld [vmem:[#allocation11 + $0x34] sm:$0xf]
    %v392 = vld [vmem:[#allocation11 + $0x38] sm:$0xf]
    %v393 = vld [vmem:[#allocation11 + $0x3c] sm:$0xf]
    %v394 = vld [vmem:[%s10] sm:$0x1]
    %v396 = vperm.slane %v394, 0
    %v414 = vunpack.c.l.b16 %v378
    %v415 = vunpack.c.l.b16 %v379
    %v416 = vunpack.c.l.b16 %v380
    %v417 = vunpack.c.l.b16 %v381
    %v418 = vunpack.c.l.b16 %v382
    %v419 = vunpack.c.l.b16 %v383
    %v420 = vunpack.c.l.b16 %v384
    %v421 = vunpack.c.l.b16 %v385
    %v422 = vunpack.c.l.b16 %v386
    %v423 = vunpack.c.l.b16 %v387
    %v424 = vunpack.c.l.b16 %v388
    %v425 = vunpack.c.l.b16 %v389
    %v426 = vunpack.c.l.b16 %v390
    %v427 = vunpack.c.l.b16 %v391
    %v428 = vunpack.c.l.b16 %v392
    %v429 = vunpack.c.l.b16 %v393
    %v430 = vpack.c.b16 %v415, %v414
    %v431 = vpack.c.b16 %v417, %v416
    %v432 = vpack.c.b16 %v419, %v418
    %v433 = vpack.c.b16 %v421, %v420
    %v434 = vpack.c.b16 %v423, %v422
    %v435 = vpack.c.b16 %v425, %v424
    %v436 = vpack.c.b16 %v427, %v426
    %v437 = vpack.c.b16 %v429, %v428
    %446 = vmatpush.bf16.msra.mxu0 %v437
    %447 = vmatpush.bf16.msra.mxu0 %v436
    %448 = vmatpush.bf16.msra.mxu0 %v435
    %449 = vmatpush.bf16.msra.mxu0 %v434
    %450 = vmatpush.bf16.msra.mxu0 %v433
    %451 = vmatpush.bf16.msra.mxu0 %v432
    %452 = vmatpush.bf16.msra.mxu0 %v431
    %453 = vmatpush.bf16.msra.mxu0 %v430
    %454 = vmatmul.bf16.gmra.mxu0 %v377
    %v455 = vpop.f32.mrf.mxu0
    %v456 = vadd.f32 %v396, %v455
    %v457 = vpop.f32.mrf.mxu0
    %458 = vdwg.mxu0
    %v459 = vlaneseq
    %v460 = vand.u32 %v459, 127
    %vm461 = vcmp.lt.s32.totalorder %v460, 4
    %v462 = vsel %vm461, %v456, -1e+30
    %463 = vmax.xlane.f32.xlu0 %v462
    %v464 = vpop.xlane.xlu0 %463
    %v465 = vsub.f32 %v462, %v464
    %v466 = vmul.f32 %v465, 1.442695
    %v467 = vpow.pop %v466
    %468 = vadd.xlane.f32.xlu0 %v467
    %v469 = vpop.xlane.xlu0 %468
    %v470 = vrcp.pop %v469
    %v471 = vmul.f32 %v467, %v470
    %472 = vst [vmem:[#allocation13] sm:$0xff] %v471
    // Predicated region
    $region70: #{tpu_custom_call.1} parent=1 // pred_check
      _
    $region71: #{tpu_custom_call.1} parent=1 // pred_check_branch
      %474 = sbr.rel (0) target = $region73
    $region72: #{tpu_custom_call.1} parent=1 // pred_region
      %476 = vsyncadd [#allocation4], 0
      %s478 = sshll.u32 [#allocation13], 4
      %s479 = int_to_ptr.vmem [resolvable:$true] %s478
      %s480 = sshll.u32 %s11, 4
      %s481 = int_to_ptr.hbm [resolvable:$true] %s480
      %483 = dma.vmem_to_hbm [thread:$0]  %s479, 128, %s481, [#allocation4]
    $region73: #{tpu_custom_call.1} parent=1 // pred_fallthru
      _
    // Predicated region
    $region74: #{tpu_custom_call.1} parent=1 // pred_check
      _
    $region75: #{tpu_custom_call.1} parent=1 // pred_check_branch
      %485 = sbr.rel (0) target = $region77
    $region76: #{tpu_custom_call.1} parent=1 // pred_region
      %487 = dma.done [#allocation4], 128
    $region77: #{tpu_custom_call.1} parent=1 // pred_fallthru
      _
    %488 = vsyncpa [#allocation3], 1
    %489 = vsyncpa [#allocation6], 1
    %490 = vsyncpa [#allocation9], 1
    %491 = vsyncpa [#allocation12], 1
    %492 = vsyncpa [#allocation4], 1

</llo_original>
